<compile_context>
chip_gen: v7x
topology: tpu7x:2x2x1
jax: 0.10.0
libtpu: 0.0.40
codegen_flags: <defaults>
</compile_context>

<pallas_src>
import jax
import jax.numpy as jnp
from jax.experimental import pallas as pl
from jax.experimental.pallas import tpu as pltpu

LANE = 128               # lane granularity for the batch axis
MAX_TILE_N = 16384       # max samples (lanes) per grid step
MIN_PARALLEL_TILE = 8192 # if batch >= 2 of these, use >=2 (even) steps (v7x 2xTC)

# Padded per-layer feature widths (sublane axis); all multiples of 8.
F1, F2, F3 = 16, 24, 16  # 10 -> 16, 20 -> 24, 10 -> 16

# Constant-parameter slab layout, shape (64, 128) f32:
#   rows  0:20, cols  0:10  -> W2 (Linear(10->20) weight), zero-padded to (F2, F1)
#   rows 32:42, cols  0:20  -> W3 (Linear(20->10) weight), zero-padded to (F3, F2)
#   rows  0:10, col  32     -> w1 column (Linear(1->10) weight)
#   rows  0:10, col  33     -> b1
#   rows  0:20, col  34     -> b2
#   rows  0:10, col  35     -> b3
#   rows  0:10, col  36     -> w4 column (Linear(10->1) weight)
#   row   0,    col  37     -> b4
SLAB_ROWS, SLAB_COLS = 64, 128
W3_ROW0 = 32
COL_W1, COL_B1, COL_B2, COL_B3, COL_W4, COL_B4 = 32, 33, 34, 35, 36, 37

MATMUL_PRECISION = jax.lax.Precision.HIGHEST


def _round_up(n, m):
    return ((n + m - 1) // m) * m


def _choose_tiling(n):
    """Waste-aware tile / grid choice (static, per batch size)."""
    n_lanes = _round_up(n, LANE)
    steps = pl.cdiv(n_lanes, MAX_TILE_N)
    # Give ("parallel",) something to shard across v7x's two TensorCores once
    # the batch is large; negligible extra per-step overhead on v5e/v6e.
    if steps == 1 and n_lanes >= 2 * MIN_PARALLEL_TILE:
        steps = 2
    if steps > 1 and steps % 2 == 1:
        steps += 1                      # even step count -> no TC load imbalance
    tile_n = _round_up(pl.cdiv(n, steps), LANE)
    n_pad = steps * tile_n
    return tile_n, n_pad, steps


def _mlp_kernel(x_ref, slab_ref, o_ref):
    """Fused MLP forward for one batch tile.

    x_ref    : (1, T)   batch on lanes
    slab_ref : (64,128) packed constants (see layout above)
    o_ref    : (1, T)
    """
    x = x_ref[...]                        # (1, T)
    slab = slab_ref[...]                  # (64, 128) -- 8 vregs, loaded once

    w2 = slab[0:F2, 0:F1]                 # (24, 16)
    w3 = slab[W3_ROW0:W3_ROW0 + F3, 0:F2] # (16, 24)
    w1 = slab[0:F1, COL_W1:COL_W1 + 1]    # (16, 1)
    b1 = slab[0:F1, COL_B1:COL_B1 + 1]    # (16, 1)
    b2 = slab[0:F2, COL_B2:COL_B2 + 1]    # (24, 1)
    b3 = slab[0:F3, COL_B3:COL_B3 + 1]    # (16, 1)
    w4 = slab[0:F3, COL_W4:COL_W4 + 1]    # (16, 1)
    b4 = slab[0:1, COL_B4:COL_B4 + 1]     # (1, 1)

    # Layer 1: Linear(1 -> 10) — in_features == 1, pure VPU outer product.
    h = jnp.maximum(w1 * x + b1, 0.0)                                 # (16, T)

    # Layer 2: Linear(10 -> 20) on the MXU.
    h = jnp.dot(w2, h, preferred_element_type=jnp.float32,
                precision=MATMUL_PRECISION) + b2
    h = jnp.maximum(h, 0.0)                                           # (24, T)

    # Layer 3: Linear(20 -> 10) on the MXU.
    h = jnp.dot(w3, h, preferred_element_type=jnp.float32,
                precision=MATMUL_PRECISION) + b3
    h = jnp.maximum(h, 0.0)                                           # (16, T)

    # Layer 4: Linear(10 -> 1) — multiply + sublane reduce.
    out = jnp.sum(w4 * h, axis=0, keepdims=True) + b4                 # (1, T)
    o_ref[...] = out.astype(o_ref.dtype)


def pack_params(params):
    """One-time preprocessing of PyTorch-layout params (W:(out,in), b:(out,))
    into a single zero-padded (64,128) f32 slab.  Call once and reuse."""
    (w1, b1), (w2, b2), (w3, b3), (w4, b4) = params
    slab = jnp.zeros((SLAB_ROWS, SLAB_COLS), jnp.float32)
    slab = slab.at[0:20, 0:10].set(w2.astype(jnp.float32))                    # W2 (20,10)
    slab = slab.at[W3_ROW0:W3_ROW0 + 10, 0:20].set(w3.astype(jnp.float32))    # W3 (10,20)
    slab = slab.at[0:10, COL_W1].set(w1.astype(jnp.float32)[:, 0])            # w1 (10,)
    slab = slab.at[0:10, COL_B1].set(b1.astype(jnp.float32))
    slab = slab.at[0:20, COL_B2].set(b2.astype(jnp.float32))
    slab = slab.at[0:10, COL_B3].set(b3.astype(jnp.float32))
    slab = slab.at[0:10, COL_W4].set(w4.astype(jnp.float32)[0, :])            # w4 (10,)
    slab = slab.at[0, COL_B4].set(b4.astype(jnp.float32)[0])
    return slab


@jax.jit
def dnn_forward(x, slab):
    """x: (N, 1) float32. slab: output of pack_params. Returns (N, 1)."""
    n = x.shape[0]
    tile_n, n_pad, steps = _choose_tiling(n)

    # Lane-dense input row; pad only when needed ((N,1)->(1,N) is a free bitcast).
    x_flat = x.astype(jnp.float32).reshape(-1)
    if n_pad != n:
        x_flat = jnp.pad(x_flat, (0, n_pad - n))
    x_row = x_flat.reshape(1, n_pad)

    io_spec = pl.BlockSpec((1, tile_n), lambda i: (0, i))
    slab_spec = pl.BlockSpec((SLAB_ROWS, SLAB_COLS), lambda i: (0, 0))  # VMEM-resident

    out_row = pl.pallas_call(
        _mlp_kernel,
        out_shape=jax.ShapeDtypeStruct((1, n_pad), jnp.float32),
        grid=(steps,),
        in_specs=[io_spec, slab_spec],
        out_specs=io_spec,
        compiler_params=pltpu.CompilerParams(
            dimension_semantics=("parallel",),
            vmem_limit_bytes=32 * 1024 * 1024),
    )(x_row, slab)

    out = out_row.reshape(-1)
    if n_pad != n:
        out = out[:n]
    return out.reshape(n, 1)


def init_params(key):
    """Deterministic init matching PyTorch nn.Linear defaults:
    U(-1/sqrt(fan_in), +1/sqrt(fan_in)) for both W and b."""
    dims = [(1, 10), (10, 20), (20, 10), (10, 1)]  # (in, out) per layer
    params = []
    for (fan_in, fan_out) in dims:
        key, kw, kb = jax.random.split(key, 3)
        bound = 1.0 / jnp.sqrt(jnp.float32(fan_in))
        w = jax.random.uniform(kw, (fan_out, fan_in), jnp.float32, -bound, bound)
        b = jax.random.uniform(kb, (fan_out,), jnp.float32, -bound, bound)
        params.append((w, b))
    return params


def reference_forward(x, params):
    """Plain-JAX reference of the same forward pass (full-precision matmuls)."""
    h = x.astype(jnp.float32)
    for i, (w, b) in enumerate(params):
        h = jnp.dot(h, w.T, precision=jax.lax.Precision.HIGHEST) + b
        if i < len(params) - 1:
            h = jnp.maximum(h, 0.0)
    return h


def _check(x, slab, params):
    y = dnn_forward(x, slab)
    jax.block_until_ready(y)
    y_ref = reference_forward(x, params)
    assert y.shape == x.shape, (y.shape, x.shape)
    assert jnp.allclose(y, y_ref, atol=1e-5, rtol=1e-5)
    return y


if __name__ == "__main__":
    key = jax.random.PRNGKey(0)
    key, kx = jax.random.split(key)

    params = init_params(key)
    slab = pack_params(params)   # one-time weight packing (hoisted out of forward)

    # Small input consistent with the module: Linear(1, ...) -> x is (batch, 1).
    batch = 8
    x = jax.random.normal(kx, (batch, 1), jnp.float32)
    _check(x, slab, params)                       # single-step, single-tile path

    # Non-multiple batch: waste-aware single tile (4224 lanes, no 33% pad waste).
    key, kx2 = jax.random.split(key)
    x2 = jax.random.normal(kx2, (4100, 1), jnp.float32)
    _check(x2, slab, params)

    # Large batch: exercises the multi-step (even-count) pipelined/parallel grid.
    key, kx3 = jax.random.split(key)
    x3 = jax.random.normal(kx3, (16500, 1), jnp.float32)
    _check(x3, slab, params)

    print("KERNEL_OK")
</pallas_src>

<mosaic_0001>
module attributes {stable_mosaic.version = 11 : i64} {
  func.func @_mlp_kernel(%arg0: i32, %arg1: memref<1x128xf32, #tpu.memory_space<vmem>>, %arg2: memref<64x128xf32, #tpu.memory_space<vmem>>, %arg3: memref<1x128xf32, #tpu.memory_space<vmem>>) attributes {dimension_semantics = [#tpu.dimension_semantics<parallel>], iteration_bounds = array<i64: 1>, scalar_prefetch = 0 : i64, scratch_operands = 0 : i64, tpu.core_type = #tpu.core_type<tc>, window_params = [{transform_indices = @transform_0, window_bounds = array<i64: 1, 128>}, {pipeline_mode = #tpu.pipeline_mode<synchronous>, transform_indices = @transform_1, window_bounds = array<i64: 64, 128>}, {transform_indices = @transform_2, window_bounds = array<i64: 1, 128>}]} {
    %c0 = arith.constant 0 : index
    %c0_0 = arith.constant 0 : index
    %0 = vector.load %arg1[%c0, %c0_0] : memref<1x128xf32, #tpu.memory_space<vmem>>, vector<1x128xf32>
    %c0_1 = arith.constant 0 : index
    %c0_2 = arith.constant 0 : index
    %1 = vector.load %arg2[%c0_1, %c0_2] : memref<64x128xf32, #tpu.memory_space<vmem>>, vector<64x128xf32>
    %2 = vector.extract_strided_slice %1 {offsets = [0, 0], sizes = [24, 16], strides = [1, 1]} : vector<64x128xf32> to vector<24x16xf32>
    %3 = vector.extract_strided_slice %1 {offsets = [32, 0], sizes = [16, 24], strides = [1, 1]} : vector<64x128xf32> to vector<16x24xf32>
    %4 = vector.extract_strided_slice %1 {offsets = [0, 32], sizes = [16, 1], strides = [1, 1]} : vector<64x128xf32> to vector<16x1xf32>
    %5 = vector.extract_strided_slice %1 {offsets = [0, 33], sizes = [16, 1], strides = [1, 1]} : vector<64x128xf32> to vector<16x1xf32>
    %6 = vector.extract_strided_slice %1 {offsets = [0, 34], sizes = [24, 1], strides = [1, 1]} : vector<64x128xf32> to vector<24x1xf32>
    %7 = vector.extract_strided_slice %1 {offsets = [0, 35], sizes = [16, 1], strides = [1, 1]} : vector<64x128xf32> to vector<16x1xf32>
    %8 = vector.extract_strided_slice %1 {offsets = [0, 36], sizes = [16, 1], strides = [1, 1]} : vector<64x128xf32> to vector<16x1xf32>
    %9 = vector.extract_strided_slice %1 {offsets = [0, 37], sizes = [1, 1], strides = [1, 1]} : vector<64x128xf32> to vector<1x1xf32>
    %10 = vector.broadcast %4 : vector<16x1xf32> to vector<16x128xf32>
    %11 = vector.broadcast %0 : vector<1x128xf32> to vector<16x128xf32>
    %12 = arith.mulf %10, %11 : vector<16x128xf32>
    %13 = vector.broadcast %5 : vector<16x1xf32> to vector<16x128xf32>
    %14 = arith.addf %12, %13 : vector<16x128xf32>
    %cst = arith.constant 0.000000e+00 : f32
    %15 = vector.broadcast %cst : f32 to vector<16x128xf32>
    %16 = arith.maximumf %14, %15 : vector<16x128xf32>
    %cst_3 = arith.constant dense<0.000000e+00> : vector<24x128xf32>
    %17 = tpu.matmul %2, %16, %cst_3 {dimension_numbers = #tpu.dot_dimension_numbers<[1], [0], [0], [1], [0, 0, 1, 1], [], []>, precision = #tpu.contract_precision<fp32>} : vector<24x16xf32>, vector<16x128xf32>, vector<24x128xf32> -> vector<24x128xf32>
    %18 = vector.broadcast %6 : vector<24x1xf32> to vector<24x128xf32>
    %19 = arith.addf %17, %18 : vector<24x128xf32>
    %cst_4 = arith.constant 0.000000e+00 : f32
    %20 = vector.broadcast %cst_4 : f32 to vector<24x128xf32>
    %21 = arith.maximumf %19, %20 : vector<24x128xf32>
    %cst_5 = arith.constant dense<0.000000e+00> : vector<16x128xf32>
    %22 = tpu.matmul %3, %21, %cst_5 {dimension_numbers = #tpu.dot_dimension_numbers<[1], [0], [0], [1], [0, 0, 1, 1], [], []>, precision = #tpu.contract_precision<fp32>} : vector<16x24xf32>, vector<24x128xf32>, vector<16x128xf32> -> vector<16x128xf32>
    %23 = vector.broadcast %7 : vector<16x1xf32> to vector<16x128xf32>
    %24 = arith.addf %22, %23 : vector<16x128xf32>
    %cst_6 = arith.constant 0.000000e+00 : f32
    %25 = vector.broadcast %cst_6 : f32 to vector<16x128xf32>
    %26 = arith.maximumf %24, %25 : vector<16x128xf32>
    %27 = vector.broadcast %8 : vector<16x1xf32> to vector<16x128xf32>
    %28 = arith.mulf %27, %26 : vector<16x128xf32>
    %cst_7 = arith.constant dense<0.000000e+00> : vector<128xf32>
    %29 = vector.multi_reduction <add>, %28, %cst_7 [0] : vector<16x128xf32> to vector<128xf32>
    %30 = vector.shape_cast %29 : vector<128xf32> to vector<1x128xf32>
    %31 = vector.broadcast %9 : vector<1x1xf32> to vector<1x128xf32>
    %32 = arith.addf %30, %31 : vector<1x128xf32>
    %c0_8 = arith.constant 0 : index
    %c0_9 = arith.constant 0 : index
    %33 = vector.load %arg3[%c0_8, %c0_9] : memref<1x128xf32, #tpu.memory_space<vmem>>, vector<1x128xf32>
    tpu.vector_store %arg3[%c0_8, %c0_9], %32 {strides = array<i32>} : memref<1x128xf32, #tpu.memory_space<vmem>>, vector<1x128xf32>,
    return
  }
  func.func @transform_0(%arg0: i32) -> (i32, i32) {
    %c0_i32 = arith.constant 0 : i32
    %c0_i32_0 = arith.constant 0 : i32
    return %c0_i32, %arg0 : i32, i32
  }
  func.func @transform_1(%arg0: i32) -> (i32, i32) {
    %c0_i32 = arith.constant 0 : i32
    %c0_i32_0 = arith.constant 0 : i32
    %c0_i32_1 = arith.constant 0 : i32
    return %c0_i32, %c0_i32_0 : i32, i32
  }
  func.func @transform_2(%arg0: i32) -> (i32, i32) {
    %c0_i32 = arith.constant 0 : i32
    %c0_i32_0 = arith.constant 0 : i32
    return %c0_i32, %arg0 : i32, i32
  }
}

</mosaic_0001>

<llo_original>
// kernel: dnn_forward.1
$region0: #{dnn_forward.1}
  #allocation0 [shape = 'u32[]', space=smem, size = 0x4, offset = 0x4, fixed_abs, tag = 'smem constant byte address 0x4 - core index']
  #allocation1 [shape = 'u32[144,128]{1,0:T(1,128)}', space=vmem, size = 0x12000, scoped, tag = 'internal scratch']
  %s0 = inlined_call_operand.vmem [shape: f32[1,128], index: 0, kind: input, shape index: {}]
  %s1 = inlined_call_operand.hbm [shape: f32[64,128], index: 1, kind: input, shape index: {}]
  %s2 = inlined_call_operand.vmem [shape: f32[1,128], index: 2, kind: output, shape index: {}]
  %s3 = sld [smem:[#allocation0]]
  $region22: #{dnn_forward.1} parent=0
    _
  %s5 = ssub.s32 1, %s3
  %s6 = scalar_select 0, %s5, %s3
  $region1: #{dnn_forward.1} parent=0
    #allocation2 [shape = 'u8[32768]{0}', space=vmem, size = 0x8000, scoped, tag = 'input window, operand 1, single buffered']
    #allocation3 [shape = 's32[1]{0}', space=sflag, size = 0x4, scoped, tag = 'scoped memory for dnn_forward.1']
    %7 = vsyncpa [#allocation3], 0
    // Predicated region
    $region2: #{dnn_forward.1} parent=1 // pred_check
      _
    $region3: #{dnn_forward.1} parent=1 // pred_check_branch
      %9 = sbr.rel (0) target = $region5
    $region4: #{dnn_forward.1} parent=1 // pred_region
      _
    $region5: #{dnn_forward.1} parent=1 // pred_fallthru
      _
    // Predicated region
    $region6: #{dnn_forward.1} parent=1 // pred_check
      _
    $region7: #{dnn_forward.1} parent=1 // pred_check_branch
      %11 = sbr.rel (0) target = $region9
    $region8: #{dnn_forward.1} parent=1 // pred_region
      %s13 = ssub.s32 1024, 1024
      %14 = vsyncadd [#allocation3], %s13
      %s15 = sshll.u32 [#allocation2], 4
      %s16 = int_to_ptr.vmem [resolvable:$true] %s15
      %21 = dma.hbm_to_vmem [thread:$0]  %s1, 1024, %s16, [#allocation3], 128, 128, 8
    $region9: #{dnn_forward.1} parent=1 // pred_fallthru
      _
    // Predicated region
    $region10: #{dnn_forward.1} parent=1 // pred_check
      _
    $region11: #{dnn_forward.1} parent=1 // pred_check_branch
      %23 = sbr.rel (0) target = $region13
    $region12: #{dnn_forward.1} parent=1 // pred_region
      %24 = dma.done [#allocation3], 1024
    $region13: #{dnn_forward.1} parent=1 // pred_fallthru
      _
    %v25 = vld [vmem:[%s0] sm:$0x1]
    %v26 = vld [vmem:[#allocation2] sm:$0xff]
    %v27 = vld [vmem:[#allocation2 + $0x8] sm:$0xff]
    %v28 = vld [vmem:[#allocation2 + $0x10] sm:$0xff]
    %v29 = vld [vmem:[#allocation2 + $0x20] sm:$0xff]
    %v30 = vld [vmem:[#allocation2 + $0x28] sm:$0xff]
    %32 = vset.pattern.permute.xlu0 32
    %33 = vperm.xlu0 %32, %v26
    %v34 = vpop.permute.xlu0 %33
    %37 = vset.pattern.permute.xlu0 32
    %38 = vperm.xlu0 %37, %v27
    %v39 = vpop.permute.xlu0 %38
    %v42 = vlaneseq
    %v43 = vshrl.u32 %v42, 7
    %v44 = vsub.s32 0, %v43
    %v45 = vrot.slane %v25, %v44
    %v47 = vmul.f32 %v34, %v45
    %v48 = vmul.f32 %v39, %v45
    %49 = vset.pattern.permute.xlu0 33
    %50 = vperm.xlu0 %49, %v26
    %v51 = vpop.permute.xlu0 %50
    %53 = vset.pattern.permute.xlu0 33
    %54 = vperm.xlu0 %53, %v27
    %v55 = vpop.permute.xlu0 %54
    %v57 = vadd.f32 %v47, %v51
    %v58 = vadd.f32 %v48, %v55
    %v59 = vmax.f32 %v57, 0.0
    %v60 = vmax.f32 %v58, 0.0
    %61 = vset.pattern.permute.xlu0 34
    %62 = vperm.xlu0 %61, %v26
    %v63 = vpop.permute.xlu0 %62
    %65 = vset.pattern.permute.xlu0 34
    %66 = vperm.xlu0 %65, %v27
    %v67 = vpop.permute.xlu0 %66
    %70 = vset.pattern.permute.xlu0 34
    %71 = vperm.xlu0 %70, %v28
    %v72 = vpop.permute.xlu0 %71
    %vm74 = vcmask 130048
    %v75 = vsel %vm74, %v26, 0
    %v77 = vsel %vm74, %v27, 0
    %v79 = vsel %vm74, %v28, 0
    %81 = vmatprep.subr.mxu0 0.0
    %v82 = vand.u32 %v59, 4294901760
    %83 = vmatpush1.msra.mxu0 %v82
    %84 = vmatprep.subr.mxu0 0.0
    %v85 = vand.u32 %v60, 4294901760
    %86 = vmatpush1.msra.mxu0 %v85
    %87 = vmatprep.subr.mxu0 0.0
    %88 = vmatpush1.msra.mxu0 0.0
    %89 = vmatprep.subr.mxu0 0.0
    %90 = vmatpush1.msra.mxu0 0.0
    %91 = vmatprep.subr.mxu0 0.0
    %92 = vmatpush1.msra.mxu0 0.0
    %93 = vmatprep.subr.mxu0 0.0
    %94 = vmatpush1.msra.mxu0 0.0
    %95 = vmatprep.subr.mxu0 0.0
    %96 = vmatpush1.msra.mxu0 0.0
    %97 = vmatprep.subr.mxu0 0.0
    %98 = vmatpush1.msra.mxu0 0.0
    %99 = vmatprep.subr.mxu0 0.0
    %100 = vmatpush1.msra.mxu0 0.0
    %101 = vmatprep.subr.mxu0 0.0
    %102 = vmatpush1.msra.mxu0 0.0
    %103 = vmatprep.subr.mxu0 0.0
    %104 = vmatpush1.msra.mxu0 0.0
    %105 = vmatprep.subr.mxu0 0.0
    %106 = vmatpush1.msra.mxu0 0.0
    %107 = vmatprep.subr.mxu0 0.0
    %108 = vmatpush1.msra.mxu0 0.0
    %109 = vmatprep.subr.mxu0 0.0
    %110 = vmatpush1.msra.mxu0 0.0
    %111 = vmatprep.subr.mxu0 0.0
    %112 = vmatpush1.msra.mxu0 0.0
    %113 = vmatprep.subr.mxu0 0.0
    %114 = vmatpush1.msra.mxu0 0.0
    %115 = vmatprep.subr.mxu0 0.0
    %116 = vmatpush1.msra.mxu0 0.0
    %117 = vmatprep.subr.mxu0 0.0
    %118 = vmatpush1.msra.mxu0 0.0
    %119 = vmatprep.subr.mxu0 0.0
    %120 = vmatpush1.msra.mxu0 0.0
    %121 = vmatprep.subr.mxu0 0.0
    %122 = vmatpush1.msra.mxu0 0.0
    %123 = vmatprep.subr.mxu0 0.0
    %124 = vmatpush1.msra.mxu0 0.0
    %125 = vmatprep.subr.mxu0 0.0
    %126 = vmatpush1.msra.mxu0 0.0
    %127 = vmatprep.subr.mxu0 0.0
    %128 = vmatpush1.msra.mxu0 0.0
    %129 = vmatprep.subr.mxu0 0.0
    %130 = vmatpush1.msra.mxu0 0.0
    %131 = vmatprep.subr.mxu0 0.0
    %132 = vmatpush1.msra.mxu0 0.0
    %133 = vmatprep.subr.mxu0 0.0
    %134 = vmatpush1.msra.mxu0 0.0
    %135 = vmatprep.subr.mxu0 0.0
    %136 = vmatpush1.msra.mxu0 0.0
    %137 = vmatprep.subr.mxu0 0.0
    %138 = vmatpush1.msra.mxu0 0.0
    %139 = vmatprep.subr.mxu0 0.0
    %140 = vmatpush1.msra.mxu0 0.0
    %141 = vmatprep.subr.mxu0 0.0
    %142 = vmatpush1.msra.mxu0 0.0
    %143 = vmatprep.subr.mxu0 0.0
    %144 = vmatpush1.msra.mxu0 0.0
    %145 = vmatprep.subr.mxu0 0.0
    %146 = vmatpush1.msra.mxu0 0.0
    %147 = vmatprep.mubr.f32.mxu0 0.0
    %v148 = vand.u32 %v75, 4294901760
    %v149 = vsub.f32 %v75, %v148
    %v150 = vand.u32 %v149, 4294901760
    %v151 = vsub.f32 %v149, %v150
    %v152 = vand.u32 %v151, 4294901760
    %153 = vmatmul.mubr.f32.gmra.mrb[0].mxu0 %v152
    %v154 = vpop.f32.mrb[0].mxu0
    %v155 = vadd.f32 %v63, %v154
    %v156 = vpop.f32.mrb[0].mxu0
    %157 = vmatprep.mubr.f32.mxu0 0.0
    %v158 = vand.u32 %v77, 4294901760
    %v159 = vsub.f32 %v77, %v158
    %v160 = vand.u32 %v159, 4294901760
    %v161 = vsub.f32 %v159, %v160
    %v162 = vand.u32 %v161, 4294901760
    %163 = vmatmul.mubr.f32.gmra.mrb[0].mxu0 %v162
    %v164 = vpop.f32.mrb[0].mxu0
    %v165 = vadd.f32 %v67, %v164
    %v166 = vpop.f32.mrb[0].mxu0
    %167 = vmatprep.mubr.f32.mxu0 0.0
    %v168 = vand.u32 %v79, 4294901760
    %v169 = vsub.f32 %v79, %v168
    %v170 = vand.u32 %v169, 4294901760
    %v171 = vsub.f32 %v169, %v170
    %v172 = vand.u32 %v171, 4294901760
    %173 = vmatmul.mubr.f32.gmra.mrb[0].mxu0 %v172
    %v174 = vpop.f32.mrb[0].mxu0
    %v175 = vadd.f32 %v72, %v174
    %v176 = vpop.f32.mrb[0].mxu0
    %177 = vdwg.mxu0
    %178 = vmatprep.subr.mxu0 0.0
    %v179 = vand.u32 %v59, 4294901760
    %v180 = vsub.f32 %v59, %v179
    %v181 = vand.u32 %v180, 4294901760
    %v182 = vsub.f32 %v180, %v181
    %v183 = vand.u32 %v182, 4294901760
    %184 = vmatpush1.msra.mxu0 %v183
    %185 = vmatprep.subr.mxu0 0.0
    %v186 = vand.u32 %v60, 4294901760
    %v187 = vsub.f32 %v60, %v186
    %v188 = vand.u32 %v187, 4294901760
    %v189 = vsub.f32 %v187, %v188
    %v190 = vand.u32 %v189, 4294901760
    %191 = vmatpush1.msra.mxu0 %v190
    %192 = vmatprep.subr.mxu0 0.0
    %193 = vmatpush1.msra.mxu0 0.0
    %194 = vmatprep.subr.mxu0 0.0
    %195 = vmatpush1.msra.mxu0 0.0
    %196 = vmatprep.subr.mxu0 0.0
    %197 = vmatpush1.msra.mxu0 0.0
    %198 = vmatprep.subr.mxu0 0.0
    %199 = vmatpush1.msra.mxu0 0.0
    %200 = vmatprep.subr.mxu0 0.0
    %201 = vmatpush1.msra.mxu0 0.0
    %202 = vmatprep.subr.mxu0 0.0
    %203 = vmatpush1.msra.mxu0 0.0
    %204 = vmatprep.subr.mxu0 0.0
    %205 = vmatpush1.msra.mxu0 0.0
    %206 = vmatprep.subr.mxu0 0.0
    %207 = vmatpush1.msra.mxu0 0.0
    %208 = vmatprep.subr.mxu0 0.0
    %209 = vmatpush1.msra.mxu0 0.0
    %210 = vmatprep.subr.mxu0 0.0
    %211 = vmatpush1.msra.mxu0 0.0
    %212 = vmatprep.subr.mxu0 0.0
    %213 = vmatpush1.msra.mxu0 0.0
    %214 = vmatprep.subr.mxu0 0.0
    %215 = vmatpush1.msra.mxu0 0.0
    %216 = vmatprep.subr.mxu0 0.0
    %217 = vmatpush1.msra.mxu0 0.0
    %218 = vmatprep.subr.mxu0 0.0
    %219 = vmatpush1.msra.mxu0 0.0
    %220 = vmatprep.subr.mxu0 0.0
    %221 = vmatpush1.msra.mxu0 0.0
    %222 = vmatprep.subr.mxu0 0.0
    %223 = vmatpush1.msra.mxu0 0.0
    %224 = vmatprep.subr.mxu0 0.0
    %225 = vmatpush1.msra.mxu0 0.0
    %226 = vmatprep.subr.mxu0 0.0
    %227 = vmatpush1.msra.mxu0 0.0
    %228 = vmatprep.subr.mxu0 0.0
    %229 = vmatpush1.msra.mxu0 0.0
    %230 = vmatprep.subr.mxu0 0.0
    %231 = vmatpush1.msra.mxu0 0.0
    %232 = vmatprep.subr.mxu0 0.0
    %233 = vmatpush1.msra.mxu0 0.0
    %234 = vmatprep.subr.mxu0 0.0
    %235 = vmatpush1.msra.mxu0 0.0
    %236 = vmatprep.subr.mxu0 0.0
    %237 = vmatpush1.msra.mxu0 0.0
    %238 = vmatprep.subr.mxu0 0.0
    %239 = vmatpush1.msra.mxu0 0.0
    %240 = vmatprep.subr.mxu0 0.0
    %241 = vmatpush1.msra.mxu0 0.0
    %242 = vmatprep.subr.mxu0 0.0
    %243 = vmatpush1.msra.mxu0 0.0
    %244 = vmatprep.subr.mxu0 0.0
    %245 = vmatpush1.msra.mxu0 0.0
    %246 = vmatprep.subr.mxu0 0.0
    %247 = vmatpush1.msra.mxu0 0.0
    %248 = vmatprep.subr.mxu0 0.0
    %249 = vmatpush1.msra.mxu0 0.0
    %250 = vmatprep.subr.mxu0 0.0
    %251 = vmatpush1.msra.mxu0 0.0
    %252 = vmatprep.mubr.f32.mxu0 0.0
    %v253 = vand.u32 %v75, 4294901760
    %254 = vmatmul.mubr.f32.gmra.mrb[0].mxu0 %v253
    %v255 = vpop.f32.mrb[0].mxu0
    %v256 = vadd.f32 %v155, %v255
    %v257 = vpop.f32.mrb[0].mxu0
    %258 = vmatprep.mubr.f32.mxu0 0.0
    %v259 = vand.u32 %v77, 4294901760
    %260 = vmatmul.mubr.f32.gmra.mrb[0].mxu0 %v259
    %v261 = vpop.f32.mrb[0].mxu0
    %v262 = vadd.f32 %v165, %v261
    %v263 = vpop.f32.mrb[0].mxu0
    %264 = vmatprep.mubr.f32.mxu0 0.0
    %v265 = vand.u32 %v79, 4294901760
    %266 = vmatmul.mubr.f32.gmra.mrb[0].mxu0 %v265
    %v267 = vpop.f32.mrb[0].mxu0
    %v268 = vadd.f32 %v175, %v267
    %v269 = vpop.f32.mrb[0].mxu0
    %270 = vdwg.mxu0
    %271 = vmatprep.subr.mxu0 0.0
    %v272 = vand.u32 %v59, 4294901760
    %v273 = vsub.f32 %v59, %v272
    %274 = vmatpush1.msra.mxu0 %v273
    %275 = vmatprep.subr.mxu0 0.0
    %v276 = vand.u32 %v60, 4294901760
    %v277 = vsub.f32 %v60, %v276
    %278 = vmatpush1.msra.mxu0 %v277
    %279 = vmatprep.subr.mxu0 0.0
    %280 = vmatpush1.msra.mxu0 0.0
    %281 = vmatprep.subr.mxu0 0.0
    %282 = vmatpush1.msra.mxu0 0.0
    %283 = vmatprep.subr.mxu0 0.0
    %284 = vmatpush1.msra.mxu0 0.0
    %285 = vmatprep.subr.mxu0 0.0
    %286 = vmatpush1.msra.mxu0 0.0
    %287 = vmatprep.subr.mxu0 0.0
    %288 = vmatpush1.msra.mxu0 0.0
    %289 = vmatprep.subr.mxu0 0.0
    %290 = vmatpush1.msra.mxu0 0.0
    %291 = vmatprep.subr.mxu0 0.0
    %292 = vmatpush1.msra.mxu0 0.0
    %293 = vmatprep.subr.mxu0 0.0
    %294 = vmatpush1.msra.mxu0 0.0
    %295 = vmatprep.subr.mxu0 0.0
    %296 = vmatpush1.msra.mxu0 0.0
    %297 = vmatprep.subr.mxu0 0.0
    %298 = vmatpush1.msra.mxu0 0.0
    %299 = vmatprep.subr.mxu0 0.0
    %300 = vmatpush1.msra.mxu0 0.0
    %301 = vmatprep.subr.mxu0 0.0
    %302 = vmatpush1.msra.mxu0 0.0
    %303 = vmatprep.subr.mxu0 0.0
    %304 = vmatpush1.msra.mxu0 0.0
    %305 = vmatprep.subr.mxu0 0.0
    %306 = vmatpush1.msra.mxu0 0.0
    %307 = vmatprep.subr.mxu0 0.0
    %308 = vmatpush1.msra.mxu0 0.0
    %309 = vmatprep.subr.mxu0 0.0
    %310 = vmatpush1.msra.mxu0 0.0
    %311 = vmatprep.subr.mxu0 0.0
    %312 = vmatpush1.msra.mxu0 0.0
    %313 = vmatprep.subr.mxu0 0.0
    %314 = vmatpush1.msra.mxu0 0.0
    %315 = vmatprep.subr.mxu0 0.0
    %316 = vmatpush1.msra.mxu0 0.0
    %317 = vmatprep.subr.mxu0 0.0
    %318 = vmatpush1.msra.mxu0 0.0
    %319 = vmatprep.subr.mxu0 0.0
    %320 = vmatpush1.msra.mxu0 0.0
    %321 = vmatprep.subr.mxu0 0.0
    %322 = vmatpush1.msra.mxu0 0.0
    %323 = vmatprep.subr.mxu0 0.0
    %324 = vmatpush1.msra.mxu0 0.0
    %325 = vmatprep.subr.mxu0 0.0
    %326 = vmatpush1.msra.mxu0 0.0
    %327 = vmatprep.subr.mxu0 0.0
    %328 = vmatpush1.msra.mxu0 0.0
    %329 = vmatprep.subr.mxu0 0.0
    %330 = vmatpush1.msra.mxu0 0.0
    %331 = vmatprep.subr.mxu0 0.0
    %332 = vmatpush1.msra.mxu0 0.0
    %333 = vmatprep.subr.mxu0 0.0
    %334 = vmatpush1.msra.mxu0 0.0
    %335 = vmatprep.subr.mxu0 0.0
    %336 = vmatpush1.msra.mxu0 0.0
    %337 = vmatprep.subr.mxu0 0.0
    %338 = vmatpush1.msra.mxu0 0.0
    %339 = vmatprep.mubr.f32.mxu0 0.0
    %v340 = vand.u32 %v75, 4294901760
    %v341 = vsub.f32 %v75, %v340
    %342 = vmatmul.mubr.f32.gmra.mrb[0].mxu0 %v341
    %v343 = vpop.f32.mrb[0].mxu0
    %v344 = vadd.f32 %v256, %v343
    %v345 = vpop.f32.mrb[0].mxu0
    %346 = vmatprep.mubr.f32.mxu0 0.0
    %v347 = vand.u32 %v77, 4294901760
    %v348 = vsub.f32 %v77, %v347
    %349 = vmatmul.mubr.f32.gmra.mrb[0].mxu0 %v348
    %v350 = vpop.f32.mrb[0].mxu0
    %v351 = vadd.f32 %v262, %v350
    %v352 = vpop.f32.mrb[0].mxu0
    %353 = vmatprep.mubr.f32.mxu0 0.0
    %v354 = vand.u32 %v79, 4294901760
    %v355 = vsub.f32 %v79, %v354
    %356 = vmatmul.mubr.f32.gmra.mrb[0].mxu0 %v355
    %v357 = vpop.f32.mrb[0].mxu0
    %v358 = vadd.f32 %v268, %v357
    %v359 = vpop.f32.mrb[0].mxu0
    %360 = vdwg.mxu0
    %361 = vmatprep.subr.mxu0 0.0
    %v362 = vand.u32 %v59, 4294901760
    %363 = vmatpush1.msra.mxu0 %v362
    %364 = vmatprep.subr.mxu0 0.0
    %v365 = vand.u32 %v60, 4294901760
    %366 = vmatpush1.msra.mxu0 %v365
    %367 = vmatprep.subr.mxu0 0.0
    %368 = vmatpush1.msra.mxu0 0.0
    %369 = vmatprep.subr.mxu0 0.0
    %370 = vmatpush1.msra.mxu0 0.0
    %371 = vmatprep.subr.mxu0 0.0
    %372 = vmatpush1.msra.mxu0 0.0
    %373 = vmatprep.subr.mxu0 0.0
    %374 = vmatpush1.msra.mxu0 0.0
    %375 = vmatprep.subr.mxu0 0.0
    %376 = vmatpush1.msra.mxu0 0.0
    %377 = vmatprep.subr.mxu0 0.0
    %378 = vmatpush1.msra.mxu0 0.0
    %379 = vmatprep.subr.mxu0 0.0
    %380 = vmatpush1.msra.mxu0 0.0
    %381 = vmatprep.subr.mxu0 0.0
    %382 = vmatpush1.msra.mxu0 0.0
    %383 = vmatprep.subr.mxu0 0.0
    %384 = vmatpush1.msra.mxu0 0.0
    %385 = vmatprep.subr.mxu0 0.0
    %386 = vmatpush1.msra.mxu0 0.0
    %387 = vmatprep.subr.mxu0 0.0
    %388 = vmatpush1.msra.mxu0 0.0
    %389 = vmatprep.subr.mxu0 0.0
    %390 = vmatpush1.msra.mxu0 0.0
    %391 = vmatprep.subr.mxu0 0.0
    %392 = vmatpush1.msra.mxu0 0.0
    %393 = vmatprep.subr.mxu0 0.0
    %394 = vmatpush1.msra.mxu0 0.0
    %395 = vmatprep.subr.mxu0 0.0
    %396 = vmatpush1.msra.mxu0 0.0
    %397 = vmatprep.subr.mxu0 0.0
    %398 = vmatpush1.msra.mxu0 0.0
    %399 = vmatprep.subr.mxu0 0.0
    %400 = vmatpush1.msra.mxu0 0.0
    %401 = vmatprep.subr.mxu0 0.0
    %402 = vmatpush1.msra.mxu0 0.0
    %403 = vmatprep.subr.mxu0 0.0
    %404 = vmatpush1.msra.mxu0 0.0
    %405 = vmatprep.subr.mxu0 0.0
    %406 = vmatpush1.msra.mxu0 0.0
    %407 = vmatprep.subr.mxu0 0.0
    %408 = vmatpush1.msra.mxu0 0.0
    %409 = vmatprep.subr.mxu0 0.0
    %410 = vmatpush1.msra.mxu0 0.0
    %411 = vmatprep.subr.mxu0 0.0
    %412 = vmatpush1.msra.mxu0 0.0
    %413 = vmatprep.subr.mxu0 0.0
    %414 = vmatpush1.msra.mxu0 0.0
    %415 = vmatprep.subr.mxu0 0.0
    %416 = vmatpush1.msra.mxu0 0.0
    %417 = vmatprep.subr.mxu0 0.0
    %418 = vmatpush1.msra.mxu0 0.0
    %419 = vmatprep.subr.mxu0 0.0
    %420 = vmatpush1.msra.mxu0 0.0
    %421 = vmatprep.subr.mxu0 0.0
    %422 = vmatpush1.msra.mxu0 0.0
    %423 = vmatprep.subr.mxu0 0.0
    %424 = vmatpush1.msra.mxu0 0.0
    %425 = vmatprep.subr.mxu0 0.0
    %426 = vmatpush1.msra.mxu0 0.0
    %427 = vmatprep.mubr.f32.mxu0 0.0
    %v428 = vand.u32 %v75, 4294901760
    %v429 = vsub.f32 %v75, %v428
    %v430 = vand.u32 %v429, 4294901760
    %431 = vmatmul.mubr.f32.gmra.mrb[0].mxu0 %v430
    %v432 = vpop.f32.mrb[0].mxu0
    %v433 = vadd.f32 %v344, %v432
    %v434 = vpop.f32.mrb[0].mxu0
    %435 = vmatprep.mubr.f32.mxu0 0.0
    %v436 = vand.u32 %v77, 4294901760
    %v437 = vsub.f32 %v77, %v436
    %v438 = vand.u32 %v437, 4294901760
    %439 = vmatmul.mubr.f32.gmra.mrb[0].mxu0 %v438
    %v440 = vpop.f32.mrb[0].mxu0
    %v441 = vadd.f32 %v351, %v440
    %v442 = vpop.f32.mrb[0].mxu0
    %443 = vmatprep.mubr.f32.mxu0 0.0
    %v444 = vand.u32 %v79, 4294901760
    %v445 = vsub.f32 %v79, %v444
    %v446 = vand.u32 %v445, 4294901760
    %447 = vmatmul.mubr.f32.gmra.mrb[0].mxu0 %v446
    %v448 = vpop.f32.mrb[0].mxu0
    %v449 = vadd.f32 %v358, %v448
    %v450 = vpop.f32.mrb[0].mxu0
    %451 = vdwg.mxu0
    %452 = vmatprep.subr.mxu0 0.0
    %v453 = vand.u32 %v59, 4294901760
    %v454 = vsub.f32 %v59, %v453
    %v455 = vand.u32 %v454, 4294901760
    %456 = vmatpush1.msra.mxu0 %v455
    %457 = vmatprep.subr.mxu0 0.0
    %v458 = vand.u32 %v60, 4294901760
    %v459 = vsub.f32 %v60, %v458
    %v460 = vand.u32 %v459, 4294901760
    %461 = vmatpush1.msra.mxu0 %v460
    %462 = vmatprep.subr.mxu0 0.0
    %463 = vmatpush1.msra.mxu0 0.0
    %464 = vmatprep.subr.mxu0 0.0
    %465 = vmatpush1.msra.mxu0 0.0
    %466 = vmatprep.subr.mxu0 0.0
    %467 = vmatpush1.msra.mxu0 0.0
    %468 = vmatprep.subr.mxu0 0.0
    %469 = vmatpush1.msra.mxu0 0.0
    %470 = vmatprep.subr.mxu0 0.0
    %471 = vmatpush1.msra.mxu0 0.0
    %472 = vmatprep.subr.mxu0 0.0
    %473 = vmatpush1.msra.mxu0 0.0
    %474 = vmatprep.subr.mxu0 0.0
    %475 = vmatpush1.msra.mxu0 0.0
    %476 = vmatprep.subr.mxu0 0.0
    %477 = vmatpush1.msra.mxu0 0.0
    %478 = vmatprep.subr.mxu0 0.0
    %479 = vmatpush1.msra.mxu0 0.0
    %480 = vmatprep.subr.mxu0 0.0
    %481 = vmatpush1.msra.mxu0 0.0
    %482 = vmatprep.subr.mxu0 0.0
    %483 = vmatpush1.msra.mxu0 0.0
    %484 = vmatprep.subr.mxu0 0.0
    %485 = vmatpush1.msra.mxu0 0.0
    %486 = vmatprep.subr.mxu0 0.0
    %487 = vmatpush1.msra.mxu0 0.0
    %488 = vmatprep.subr.mxu0 0.0
    %489 = vmatpush1.msra.mxu0 0.0
    %490 = vmatprep.subr.mxu0 0.0
    %491 = vmatpush1.msra.mxu0 0.0
    %492 = vmatprep.subr.mxu0 0.0
    %493 = vmatpush1.msra.mxu0 0.0
    %494 = vmatprep.subr.mxu0 0.0
    %495 = vmatpush1.msra.mxu0 0.0
    %496 = vmatprep.subr.mxu0 0.0
    %497 = vmatpush1.msra.mxu0 0.0
    %498 = vmatprep.subr.mxu0 0.0
    %499 = vmatpush1.msra.mxu0 0.0
    %500 = vmatprep.subr.mxu0 0.0
    %501 = vmatpush1.msra.mxu0 0.0
    %502 = vmatprep.subr.mxu0 0.0
    %503 = vmatpush1.msra.mxu0 0.0
    %504 = vmatprep.subr.mxu0 0.0
    %505 = vmatpush1.msra.mxu0 0.0
    %506 = vmatprep.subr.mxu0 0.0
    %507 = vmatpush1.msra.mxu0 0.0
    %508 = vmatprep.subr.mxu0 0.0
    %509 = vmatpush1.msra.mxu0 0.0
    %510 = vmatprep.subr.mxu0 0.0
    %511 = vmatpush1.msra.mxu0 0.0
    %512 = vmatprep.subr.mxu0 0.0
    %513 = vmatpush1.msra.mxu0 0.0
    %514 = vmatprep.subr.mxu0 0.0
    %515 = vmatpush1.msra.mxu0 0.0
    %516 = vmatprep.subr.mxu0 0.0
    %517 = vmatpush1.msra.mxu0 0.0
    %518 = vmatprep.subr.mxu0 0.0
    %519 = vmatpush1.msra.mxu0 0.0
    %520 = vmatprep.subr.mxu0 0.0
    %521 = vmatpush1.msra.mxu0 0.0
    %522 = vmatprep.mubr.f32.mxu0 0.0
    %v523 = vand.u32 %v75, 4294901760
    %524 = vmatmul.mubr.f32.gmra.mrb[0].mxu0 %v523
    %v525 = vpop.f32.mrb[0].mxu0
    %v526 = vadd.f32 %v433, %v525
    %v527 = vpop.f32.mrb[0].mxu0
    %528 = vmatprep.mubr.f32.mxu0 0.0
    %v529 = vand.u32 %v77, 4294901760
    %530 = vmatmul.mubr.f32.gmra.mrb[0].mxu0 %v529
    %v531 = vpop.f32.mrb[0].mxu0
    %v532 = vadd.f32 %v441, %v531
    %v533 = vpop.f32.mrb[0].mxu0
    %534 = vmatprep.mubr.f32.mxu0 0.0
    %v535 = vand.u32 %v79, 4294901760
    %536 = vmatmul.mubr.f32.gmra.mrb[0].mxu0 %v535
    %v537 = vpop.f32.mrb[0].mxu0
    %v538 = vadd.f32 %v449, %v537
    %v539 = vpop.f32.mrb[0].mxu0
    %540 = vdwg.mxu0
    %541 = vmatprep.subr.mxu0 0.0
    %v542 = vand.u32 %v59, 4294901760
    %543 = vmatpush1.msra.mxu0 %v542
    %544 = vmatprep.subr.mxu0 0.0
    %v545 = vand.u32 %v60, 4294901760
    %546 = vmatpush1.msra.mxu0 %v545
    %547 = vmatprep.subr.mxu0 0.0
    %548 = vmatpush1.msra.mxu0 0.0
    %549 = vmatprep.subr.mxu0 0.0
    %550 = vmatpush1.msra.mxu0 0.0
    %551 = vmatprep.subr.mxu0 0.0
    %552 = vmatpush1.msra.mxu0 0.0
    %553 = vmatprep.subr.mxu0 0.0
    %554 = vmatpush1.msra.mxu0 0.0
    %555 = vmatprep.subr.mxu0 0.0
    %556 = vmatpush1.msra.mxu0 0.0
    %557 = vmatprep.subr.mxu0 0.0
    %558 = vmatpush1.msra.mxu0 0.0
    %559 = vmatprep.subr.mxu0 0.0
    %560 = vmatpush1.msra.mxu0 0.0
    %561 = vmatprep.subr.mxu0 0.0
    %562 = vmatpush1.msra.mxu0 0.0
    %563 = vmatprep.subr.mxu0 0.0
    %564 = vmatpush1.msra.mxu0 0.0
    %565 = vmatprep.subr.mxu0 0.0
    %566 = vmatpush1.msra.mxu0 0.0
    %567 = vmatprep.subr.mxu0 0.0
    %568 = vmatpush1.msra.mxu0 0.0
    %569 = vmatprep.subr.mxu0 0.0
    %570 = vmatpush1.msra.mxu0 0.0
    %571 = vmatprep.subr.mxu0 0.0
    %572 = vmatpush1.msra.mxu0 0.0
    %573 = vmatprep.subr.mxu0 0.0
    %574 = vmatpush1.msra.mxu0 0.0
    %575 = vmatprep.subr.mxu0 0.0
    %576 = vmatpush1.msra.mxu0 0.0
    %577 = vmatprep.subr.mxu0 0.0
    %578 = vmatpush1.msra.mxu0 0.0
    %579 = vmatprep.subr.mxu0 0.0
    %580 = vmatpush1.msra.mxu0 0.0
    %581 = vmatprep.subr.mxu0 0.0
    %582 = vmatpush1.msra.mxu0 0.0
    %583 = vmatprep.subr.mxu0 0.0
    %584 = vmatpush1.msra.mxu0 0.0
    %585 = vmatprep.subr.mxu0 0.0
    %586 = vmatpush1.msra.mxu0 0.0
    %587 = vmatprep.subr.mxu0 0.0
    %588 = vmatpush1.msra.mxu0 0.0
    %589 = vmatprep.subr.mxu0 0.0
    %590 = vmatpush1.msra.mxu0 0.0
    %591 = vmatprep.subr.mxu0 0.0
    %592 = vmatpush1.msra.mxu0 0.0
    %593 = vmatprep.subr.mxu0 0.0
    %594 = vmatpush1.msra.mxu0 0.0
    %595 = vmatprep.subr.mxu0 0.0
    %596 = vmatpush1.msra.mxu0 0.0
    %597 = vmatprep.subr.mxu0 0.0
    %598 = vmatpush1.msra.mxu0 0.0
    %599 = vmatprep.subr.mxu0 0.0
    %600 = vmatpush1.msra.mxu0 0.0
    %601 = vmatprep.subr.mxu0 0.0
    %602 = vmatpush1.msra.mxu0 0.0
    %603 = vmatprep.subr.mxu0 0.0
    %604 = vmatpush1.msra.mxu0 0.0
    %605 = vmatprep.subr.mxu0 0.0
    %606 = vmatpush1.msra.mxu0 0.0
    %607 = vmatprep.mubr.f32.mxu0 0.0
    %v608 = vand.u32 %v75, 4294901760
    %609 = vmatmul.mubr.f32.gmra.mrb[0].mxu0 %v608
    %v610 = vpop.f32.mrb[0].mxu0
    %v611 = vadd.f32 %v526, %v610
    %v612 = vpop.f32.mrb[0].mxu0
    %613 = vmatprep.mubr.f32.mxu0 0.0
    %v614 = vand.u32 %v77, 4294901760
    %615 = vmatmul.mubr.f32.gmra.mrb[0].mxu0 %v614
    %v616 = vpop.f32.mrb[0].mxu0
    %v617 = vadd.f32 %v532, %v616
    %v618 = vpop.f32.mrb[0].mxu0
    %619 = vmatprep.mubr.f32.mxu0 0.0
    %v620 = vand.u32 %v79, 4294901760
    %621 = vmatmul.mubr.f32.gmra.mrb[0].mxu0 %v620
    %v622 = vpop.f32.mrb[0].mxu0
    %v623 = vadd.f32 %v538, %v622
    %v624 = vpop.f32.mrb[0].mxu0
    %625 = vdwg.mxu0
    %v626 = vmax.f32 %v611, 0.0
    %v627 = vmax.f32 %v617, 0.0
    %v628 = vmax.f32 %v623, 0.0
    %629 = vset.pattern.permute.xlu0 35
    %630 = vperm.xlu0 %629, %v26
    %v631 = vpop.permute.xlu0 %630
    %633 = vset.pattern.permute.xlu0 35
    %634 = vperm.xlu0 %633, %v27
    %v635 = vpop.permute.xlu0 %634
    %vm637 = vcmask 195584
    %v639 = vsel %vm637, %v29, 0
    %v642 = vsel %vm637, %v30, 0
    %644 = vmatprep.subr.mxu0 0.0
    %v645 = vand.u32 %v626, 4294901760
    %646 = vmatpush1.msra.mxu0 %v645
    %647 = vmatprep.subr.mxu0 0.0
    %v648 = vand.u32 %v627, 4294901760
    %649 = vmatpush1.msra.mxu0 %v648
    %650 = vmatprep.subr.mxu0 0.0
    %v651 = vand.u32 %v628, 4294901760
    %652 = vmatpush1.msra.mxu0 %v651
    %653 = vmatprep.subr.mxu0 0.0
    %654 = vmatpush1.msra.mxu0 0.0
    %655 = vmatprep.subr.mxu0 0.0
    %656 = vmatpush1.msra.mxu0 0.0
    %657 = vmatprep.subr.mxu0 0.0
    %658 = vmatpush1.msra.mxu0 0.0
    %659 = vmatprep.subr.mxu0 0.0
    %660 = vmatpush1.msra.mxu0 0.0
    %661 = vmatprep.subr.mxu0 0.0
    %662 = vmatpush1.msra.mxu0 0.0
    %663 = vmatprep.subr.mxu0 0.0
    %664 = vmatpush1.msra.mxu0 0.0
    %665 = vmatprep.subr.mxu0 0.0
    %666 = vmatpush1.msra.mxu0 0.0
    %667 = vmatprep.subr.mxu0 0.0
    %668 = vmatpush1.msra.mxu0 0.0
    %669 = vmatprep.subr.mxu0 0.0
    %670 = vmatpush1.msra.mxu0 0.0
    %671 = vmatprep.subr.mxu0 0.0
    %672 = vmatpush1.msra.mxu0 0.0
    %673 = vmatprep.subr.mxu0 0.0
    %674 = vmatpush1.msra.mxu0 0.0
    %675 = vmatprep.subr.mxu0 0.0
    %676 = vmatpush1.msra.mxu0 0.0
    %677 = vmatprep.subr.mxu0 0.0
    %678 = vmatpush1.msra.mxu0 0.0
    %679 = vmatprep.subr.mxu0 0.0
    %680 = vmatpush1.msra.mxu0 0.0
    %681 = vmatprep.subr.mxu0 0.0
    %682 = vmatpush1.msra.mxu0 0.0
    %683 = vmatprep.subr.mxu0 0.0
    %684 = vmatpush1.msra.mxu0 0.0
    %685 = vmatprep.subr.mxu0 0.0
    %686 = vmatpush1.msra.mxu0 0.0
    %687 = vmatprep.subr.mxu0 0.0
    %688 = vmatpush1.msra.mxu0 0.0
    %689 = vmatprep.subr.mxu0 0.0
    %690 = vmatpush1.msra.mxu0 0.0
    %691 = vmatprep.subr.mxu0 0.0
    %692 = vmatpush1.msra.mxu0 0.0
    %693 = vmatprep.subr.mxu0 0.0
    %694 = vmatpush1.msra.mxu0 0.0
    %695 = vmatprep.subr.mxu0 0.0
    %696 = vmatpush1.msra.mxu0 0.0
    %697 = vmatprep.subr.mxu0 0.0
    %698 = vmatpush1.msra.mxu0 0.0
    %699 = vmatprep.subr.mxu0 0.0
    %700 = vmatpush1.msra.mxu0 0.0
    %701 = vmatprep.subr.mxu0 0.0
    %702 = vmatpush1.msra.mxu0 0.0
    %703 = vmatprep.subr.mxu0 0.0
    %704 = vmatpush1.msra.mxu0 0.0
    %705 = vmatprep.subr.mxu0 0.0
    %706 = vmatpush1.msra.mxu0 0.0
    %707 = vmatprep.subr.mxu0 0.0
    %708 = vmatpush1.msra.mxu0 0.0
    %709 = vmatprep.subr.mxu0 0.0
    %710 = vmatpush1.msra.mxu0 0.0
    %711 = vmatprep.mubr.f32.mxu0 0.0
    %v712 = vand.u32 %v639, 4294901760
    %v713 = vsub.f32 %v639, %v712
    %v714 = vand.u32 %v713, 4294901760
    %v715 = vsub.f32 %v713, %v714
    %v716 = vand.u32 %v715, 4294901760
    %717 = vmatmul.mubr.f32.gmra.mrb[0].mxu0 %v716
    %v718 = vpop.f32.mrb[0].mxu0
    %v719 = vadd.f32 %v631, %v718
    %v720 = vpop.f32.mrb[0].mxu0
    %721 = vmatprep.mubr.f32.mxu0 0.0
    %v722 = vand.u32 %v642, 4294901760
    %v723 = vsub.f32 %v642, %v722
    %v724 = vand.u32 %v723, 4294901760
    %v725 = vsub.f32 %v723, %v724
    %v726 = vand.u32 %v725, 4294901760
    %727 = vmatmul.mubr.f32.gmra.mrb[0].mxu0 %v726
    %v728 = vpop.f32.mrb[0].mxu0
    %v729 = vadd.f32 %v635, %v728
    %v730 = vpop.f32.mrb[0].mxu0
    %731 = vdwg.mxu0
    %732 = vmatprep.subr.mxu0 0.0
    %v733 = vand.u32 %v626, 4294901760
    %v734 = vsub.f32 %v626, %v733
    %v735 = vand.u32 %v734, 4294901760
    %v736 = vsub.f32 %v734, %v735
    %v737 = vand.u32 %v736, 4294901760
    %738 = vmatpush1.msra.mxu0 %v737
    %739 = vmatprep.subr.mxu0 0.0
    %v740 = vand.u32 %v627, 4294901760
    %v741 = vsub.f32 %v627, %v740
    %v742 = vand.u32 %v741, 4294901760
    %v743 = vsub.f32 %v741, %v742
    %v744 = vand.u32 %v743, 4294901760
    %745 = vmatpush1.msra.mxu0 %v744
    %746 = vmatprep.subr.mxu0 0.0
    %v747 = vand.u32 %v628, 4294901760
    %v748 = vsub.f32 %v628, %v747
    %v749 = vand.u32 %v748, 4294901760
    %v750 = vsub.f32 %v748, %v749
    %v751 = vand.u32 %v750, 4294901760
    %752 = vmatpush1.msra.mxu0 %v751
    %753 = vmatprep.subr.mxu0 0.0
    %754 = vmatpush1.msra.mxu0 0.0
    %755 = vmatprep.subr.mxu0 0.0
    %756 = vmatpush1.msra.mxu0 0.0
    %757 = vmatprep.subr.mxu0 0.0
    %758 = vmatpush1.msra.mxu0 0.0
    %759 = vmatprep.subr.mxu0 0.0
    %760 = vmatpush1.msra.mxu0 0.0
    %761 = vmatprep.subr.mxu0 0.0
    %762 = vmatpush1.msra.mxu0 0.0
    %763 = vmatprep.subr.mxu0 0.0
    %764 = vmatpush1.msra.mxu0 0.0
    %765 = vmatprep.subr.mxu0 0.0
    %766 = vmatpush1.msra.mxu0 0.0
    %767 = vmatprep.subr.mxu0 0.0
    %768 = vmatpush1.msra.mxu0 0.0
    %769 = vmatprep.subr.mxu0 0.0
    %770 = vmatpush1.msra.mxu0 0.0
    %771 = vmatprep.subr.mxu0 0.0
    %772 = vmatpush1.msra.mxu0 0.0
    %773 = vmatprep.subr.mxu0 0.0
    %774 = vmatpush1.msra.mxu0 0.0
    %775 = vmatprep.subr.mxu0 0.0
    %776 = vmatpush1.msra.mxu0 0.0
    %777 = vmatprep.subr.mxu0 0.0
    %778 = vmatpush1.msra.mxu0 0.0
    %779 = vmatprep.subr.mxu0 0.0
    %780 = vmatpush1.msra.mxu0 0.0
    %781 = vmatprep.subr.mxu0 0.0
    %782 = vmatpush1.msra.mxu0 0.0
    %783 = vmatprep.subr.mxu0 0.0
    %784 = vmatpush1.msra.mxu0 0.0
    %785 = vmatprep.subr.mxu0 0.0
    %786 = vmatpush1.msra.mxu0 0.0
    %787 = vmatprep.subr.mxu0 0.0
    %788 = vmatpush1.msra.mxu0 0.0
    %789 = vmatprep.subr.mxu0 0.0
    %790 = vmatpush1.msra.mxu0 0.0
    %791 = vmatprep.subr.mxu0 0.0
    %792 = vmatpush1.msra.mxu0 0.0
    %793 = vmatprep.subr.mxu0 0.0
    %794 = vmatpush1.msra.mxu0 0.0
    %795 = vmatprep.subr.mxu0 0.0
    %796 = vmatpush1.msra.mxu0 0.0
    %797 = vmatprep.subr.mxu0 0.0
    %798 = vmatpush1.msra.mxu0 0.0
    %799 = vmatprep.subr.mxu0 0.0
    %800 = vmatpush1.msra.mxu0 0.0
    %801 = vmatprep.subr.mxu0 0.0
    %802 = vmatpush1.msra.mxu0 0.0
    %803 = vmatprep.subr.mxu0 0.0
    %804 = vmatpush1.msra.mxu0 0.0
    %805 = vmatprep.subr.mxu0 0.0
    %806 = vmatpush1.msra.mxu0 0.0
    %807 = vmatprep.subr.mxu0 0.0
    %808 = vmatpush1.msra.mxu0 0.0
    %809 = vmatprep.subr.mxu0 0.0
    %810 = vmatpush1.msra.mxu0 0.0
    %811 = vmatprep.mubr.f32.mxu0 0.0
    %v812 = vand.u32 %v639, 4294901760
    %813 = vmatmul.mubr.f32.gmra.mrb[0].mxu0 %v812
    %v814 = vpop.f32.mrb[0].mxu0
    %v815 = vadd.f32 %v719, %v814
    %v816 = vpop.f32.mrb[0].mxu0
    %817 = vmatprep.mubr.f32.mxu0 0.0
    %v818 = vand.u32 %v642, 4294901760
    %819 = vmatmul.mubr.f32.gmra.mrb[0].mxu0 %v818
    %v820 = vpop.f32.mrb[0].mxu0
    %v821 = vadd.f32 %v729, %v820
    %v822 = vpop.f32.mrb[0].mxu0
    %823 = vdwg.mxu0
    %824 = vmatprep.subr.mxu0 0.0
    %v825 = vand.u32 %v626, 4294901760
    %v826 = vsub.f32 %v626, %v825
    %827 = vmatpush1.msra.mxu0 %v826
    %828 = vmatprep.subr.mxu0 0.0
    %v829 = vand.u32 %v627, 4294901760
    %v830 = vsub.f32 %v627, %v829
    %831 = vmatpush1.msra.mxu0 %v830
    %832 = vmatprep.subr.mxu0 0.0
    %v833 = vand.u32 %v628, 4294901760
    %v834 = vsub.f32 %v628, %v833
    %835 = vmatpush1.msra.mxu0 %v834
    %836 = vmatprep.subr.mxu0 0.0
    %837 = vmatpush1.msra.mxu0 0.0
    %838 = vmatprep.subr.mxu0 0.0
    %839 = vmatpush1.msra.mxu0 0.0
    %840 = vmatprep.subr.mxu0 0.0
    %841 = vmatpush1.msra.mxu0 0.0
    %842 = vmatprep.subr.mxu0 0.0
    %843 = vmatpush1.msra.mxu0 0.0
    %844 = vmatprep.subr.mxu0 0.0
    %845 = vmatpush1.msra.mxu0 0.0
    %846 = vmatprep.subr.mxu0 0.0
    %847 = vmatpush1.msra.mxu0 0.0
    %848 = vmatprep.subr.mxu0 0.0
    %849 = vmatpush1.msra.mxu0 0.0
    %850 = vmatprep.subr.mxu0 0.0
    %851 = vmatpush1.msra.mxu0 0.0
    %852 = vmatprep.subr.mxu0 0.0
    %853 = vmatpush1.msra.mxu0 0.0
    %854 = vmatprep.subr.mxu0 0.0
    %855 = vmatpush1.msra.mxu0 0.0
    %856 = vmatprep.subr.mxu0 0.0
    %857 = vmatpush1.msra.mxu0 0.0
    %858 = vmatprep.subr.mxu0 0.0
    %859 = vmatpush1.msra.mxu0 0.0
    %860 = vmatprep.subr.mxu0 0.0
    %861 = vmatpush1.msra.mxu0 0.0
    %862 = vmatprep.subr.mxu0 0.0
    %863 = vmatpush1.msra.mxu0 0.0
    %864 = vmatprep.subr.mxu0 0.0
    %865 = vmatpush1.msra.mxu0 0.0
    %866 = vmatprep.subr.mxu0 0.0
    %867 = vmatpush1.msra.mxu0 0.0
    %868 = vmatprep.subr.mxu0 0.0
    %869 = vmatpush1.msra.mxu0 0.0
    %870 = vmatprep.subr.mxu0 0.0
    %871 = vmatpush1.msra.mxu0 0.0
    %872 = vmatprep.subr.mxu0 0.0
    %873 = vmatpush1.msra.mxu0 0.0
    %874 = vmatprep.subr.mxu0 0.0
    %875 = vmatpush1.msra.mxu0 0.0
    %876 = vmatprep.subr.mxu0 0.0
    %877 = vmatpush1.msra.mxu0 0.0
    %878 = vmatprep.subr.mxu0 0.0
    %879 = vmatpush1.msra.mxu0 0.0
    %880 = vmatprep.subr.mxu0 0.0
    %881 = vmatpush1.msra.mxu0 0.0
    %882 = vmatprep.subr.mxu0 0.0
    %883 = vmatpush1.msra.mxu0 0.0
    %884 = vmatprep.subr.mxu0 0.0
    %885 = vmatpush1.msra.mxu0 0.0
    %886 = vmatprep.subr.mxu0 0.0
    %887 = vmatpush1.msra.mxu0 0.0
    %888 = vmatprep.subr.mxu0 0.0
    %889 = vmatpush1.msra.mxu0 0.0
    %890 = vmatprep.subr.mxu0 0.0
    %891 = vmatpush1.msra.mxu0 0.0
    %892 = vmatprep.subr.mxu0 0.0
    %893 = vmatpush1.msra.mxu0 0.0
    %894 = vmatprep.mubr.f32.mxu0 0.0
    %v895 = vand.u32 %v639, 4294901760
    %v896 = vsub.f32 %v639, %v895
    %897 = vmatmul.mubr.f32.gmra.mrb[0].mxu0 %v896
    %v898 = vpop.f32.mrb[0].mxu0
    %v899 = vadd.f32 %v815, %v898
    %v900 = vpop.f32.mrb[0].mxu0
    %901 = vmatprep.mubr.f32.mxu0 0.0
    %v902 = vand.u32 %v642, 4294901760
    %v903 = vsub.f32 %v642, %v902
    %904 = vmatmul.mubr.f32.gmra.mrb[0].mxu0 %v903
    %v905 = vpop.f32.mrb[0].mxu0
    %v906 = vadd.f32 %v821, %v905
    %v907 = vpop.f32.mrb[0].mxu0
    %908 = vdwg.mxu0
    %909 = vmatprep.subr.mxu0 0.0
    %v910 = vand.u32 %v626, 4294901760
    %911 = vmatpush1.msra.mxu0 %v910
    %912 = vmatprep.subr.mxu0 0.0
    %v913 = vand.u32 %v627, 4294901760
    %914 = vmatpush1.msra.mxu0 %v913
    %915 = vmatprep.subr.mxu0 0.0
    %v916 = vand.u32 %v628, 4294901760
    %917 = vmatpush1.msra.mxu0 %v916
    %918 = vmatprep.subr.mxu0 0.0
    %919 = vmatpush1.msra.mxu0 0.0
    %920 = vmatprep.subr.mxu0 0.0
    %921 = vmatpush1.msra.mxu0 0.0
    %922 = vmatprep.subr.mxu0 0.0
    %923 = vmatpush1.msra.mxu0 0.0
    %924 = vmatprep.subr.mxu0 0.0
    %925 = vmatpush1.msra.mxu0 0.0
    %926 = vmatprep.subr.mxu0 0.0
    %927 = vmatpush1.msra.mxu0 0.0
    %928 = vmatprep.subr.mxu0 0.0
    %929 = vmatpush1.msra.mxu0 0.0
    %930 = vmatprep.subr.mxu0 0.0
    %931 = vmatpush1.msra.mxu0 0.0
    %932 = vmatprep.subr.mxu0 0.0
    %933 = vmatpush1.msra.mxu0 0.0
    %934 = vmatprep.subr.mxu0 0.0
    %935 = vmatpush1.msra.mxu0 0.0
    %936 = vmatprep.subr.mxu0 0.0
    %937 = vmatpush1.msra.mxu0 0.0
    %938 = vmatprep.subr.mxu0 0.0
    %939 = vmatpush1.msra.mxu0 0.0
    %940 = vmatprep.subr.mxu0 0.0
    %941 = vmatpush1.msra.mxu0 0.0
    %942 = vmatprep.subr.mxu0 0.0
    %943 = vmatpush1.msra.mxu0 0.0
    %944 = vmatprep.subr.mxu0 0.0
    %945 = vmatpush1.msra.mxu0 0.0
    %946 = vmatprep.subr.mxu0 0.0
    %947 = vmatpush1.msra.mxu0 0.0
    %948 = vmatprep.subr.mxu0 0.0
    %949 = vmatpush1.msra.mxu0 0.0
    %950 = vmatprep.subr.mxu0 0.0
    %951 = vmatpush1.msra.mxu0 0.0
    %952 = vmatprep.subr.mxu0 0.0
    %953 = vmatpush1.msra.mxu0 0.0
    %954 = vmatprep.subr.mxu0 0.0
    %955 = vmatpush1.msra.mxu0 0.0
    %956 = vmatprep.subr.mxu0 0.0
    %957 = vmatpush1.msra.mxu0 0.0
    %958 = vmatprep.subr.mxu0 0.0
    %959 = vmatpush1.msra.mxu0 0.0
    %960 = vmatprep.subr.mxu0 0.0
    %961 = vmatpush1.msra.mxu0 0.0
    %962 = vmatprep.subr.mxu0 0.0
    %963 = vmatpush1.msra.mxu0 0.0
    %964 = vmatprep.subr.mxu0 0.0
    %965 = vmatpush1.msra.mxu0 0.0
    %966 = vmatprep.subr.mxu0 0.0
    %967 = vmatpush1.msra.mxu0 0.0
    %968 = vmatprep.subr.mxu0 0.0
    %969 = vmatpush1.msra.mxu0 0.0
    %970 = vmatprep.subr.mxu0 0.0
    %971 = vmatpush1.msra.mxu0 0.0
    %972 = vmatprep.subr.mxu0 0.0
    %973 = vmatpush1.msra.mxu0 0.0
    %974 = vmatprep.subr.mxu0 0.0
    %975 = vmatpush1.msra.mxu0 0.0
    %976 = vmatprep.mubr.f32.mxu0 0.0
    %v977 = vand.u32 %v639, 4294901760
    %v978 = vsub.f32 %v639, %v977
    %v979 = vand.u32 %v978, 4294901760
    %980 = vmatmul.mubr.f32.gmra.mrb[0].mxu0 %v979
    %v981 = vpop.f32.mrb[0].mxu0
    %v982 = vadd.f32 %v899, %v981
    %v983 = vpop.f32.mrb[0].mxu0
    %984 = vmatprep.mubr.f32.mxu0 0.0
    %v985 = vand.u32 %v642, 4294901760
    %v986 = vsub.f32 %v642, %v985
    %v987 = vand.u32 %v986, 4294901760
    %988 = vmatmul.mubr.f32.gmra.mrb[0].mxu0 %v987
    %v989 = vpop.f32.mrb[0].mxu0
    %v990 = vadd.f32 %v906, %v989
    %v991 = vpop.f32.mrb[0].mxu0
    %992 = vdwg.mxu0
    %993 = vmatprep.subr.mxu0 0.0
    %v994 = vand.u32 %v626, 4294901760
    %v995 = vsub.f32 %v626, %v994
    %v996 = vand.u32 %v995, 4294901760
    %997 = vmatpush1.msra.mxu0 %v996
    %998 = vmatprep.subr.mxu0 0.0
    %v999 = vand.u32 %v627, 4294901760
    %v1000 = vsub.f32 %v627, %v999
    %v1001 = vand.u32 %v1000, 4294901760
    %1002 = vmatpush1.msra.mxu0 %v1001
    %1003 = vmatprep.subr.mxu0 0.0
    %v1004 = vand.u32 %v628, 4294901760
    %v1005 = vsub.f32 %v628, %v1004
    %v1006 = vand.u32 %v1005, 4294901760
    %1007 = vmatpush1.msra.mxu0 %v1006
    %1008 = vmatprep.subr.mxu0 0.0
    %1009 = vmatpush1.msra.mxu0 0.0
    %1010 = vmatprep.subr.mxu0 0.0
    %1011 = vmatpush1.msra.mxu0 0.0
    %1012 = vmatprep.subr.mxu0 0.0
    %1013 = vmatpush1.msra.mxu0 0.0
    %1014 = vmatprep.subr.mxu0 0.0
    %1015 = vmatpush1.msra.mxu0 0.0
    %1016 = vmatprep.subr.mxu0 0.0
    %1017 = vmatpush1.msra.mxu0 0.0
    %1018 = vmatprep.subr.mxu0 0.0
    %1019 = vmatpush1.msra.mxu0 0.0
    %1020 = vmatprep.subr.mxu0 0.0
    %1021 = vmatpush1.msra.mxu0 0.0
    %1022 = vmatprep.subr.mxu0 0.0
    %1023 = vmatpush1.msra.mxu0 0.0
    %1024 = vmatprep.subr.mxu0 0.0
    %1025 = vmatpush1.msra.mxu0 0.0
    %1026 = vmatprep.subr.mxu0 0.0
    %1027 = vmatpush1.msra.mxu0 0.0
    %1028 = vmatprep.subr.mxu0 0.0
    %1029 = vmatpush1.msra.mxu0 0.0
    %1030 = vmatprep.subr.mxu0 0.0
    %1031 = vmatpush1.msra.mxu0 0.0
    %1032 = vmatprep.subr.mxu0 0.0
    %1033 = vmatpush1.msra.mxu0 0.0
    %1034 = vmatprep.subr.mxu0 0.0
    %1035 = vmatpush1.msra.mxu0 0.0
    %1036 = vmatprep.subr.mxu0 0.0
    %1037 = vmatpush1.msra.mxu0 0.0
    %1038 = vmatprep.subr.mxu0 0.0
    %1039 = vmatpush1.msra.mxu0 0.0
    %1040 = vmatprep.subr.mxu0 0.0
    %1041 = vmatpush1.msra.mxu0 0.0
    %1042 = vmatprep.subr.mxu0 0.0
    %1043 = vmatpush1.msra.mxu0 0.0
    %1044 = vmatprep.subr.mxu0 0.0
    %1045 = vmatpush1.msra.mxu0 0.0
    %1046 = vmatprep.subr.mxu0 0.0
    %1047 = vmatpush1.msra.mxu0 0.0
    %1048 = vmatprep.subr.mxu0 0.0
    %1049 = vmatpush1.msra.mxu0 0.0
    %1050 = vmatprep.subr.mxu0 0.0
    %1051 = vmatpush1.msra.mxu0 0.0
    %1052 = vmatprep.subr.mxu0 0.0
    %1053 = vmatpush1.msra.mxu0 0.0
    %1054 = vmatprep.subr.mxu0 0.0
    %1055 = vmatpush1.msra.mxu0 0.0
    %1056 = vmatprep.subr.mxu0 0.0
    %1057 = vmatpush1.msra.mxu0 0.0
    %1058 = vmatprep.subr.mxu0 0.0
    %1059 = vmatpush1.msra.mxu0 0.0
    %1060 = vmatprep.subr.mxu0 0.0
    %1061 = vmatpush1.msra.mxu0 0.0
    %1062 = vmatprep.subr.mxu0 0.0
    %1063 = vmatpush1.msra.mxu0 0.0
    %1064 = vmatprep.subr.mxu0 0.0
    %1065 = vmatpush1.msra.mxu0 0.0
    %1066 = vmatprep.mubr.f32.mxu0 0.0
    %v1067 = vand.u32 %v639, 4294901760
    %1068 = vmatmul.mubr.f32.gmra.mrb[0].mxu0 %v1067
    %v1069 = vpop.f32.mrb[0].mxu0
    %v1070 = vadd.f32 %v982, %v1069
    %v1071 = vpop.f32.mrb[0].mxu0
    %1072 = vmatprep.mubr.f32.mxu0 0.0
    %v1073 = vand.u32 %v642, 4294901760
    %1074 = vmatmul.mubr.f32.gmra.mrb[0].mxu0 %v1073
    %v1075 = vpop.f32.mrb[0].mxu0
    %v1076 = vadd.f32 %v990, %v1075
    %v1077 = vpop.f32.mrb[0].mxu0
    %1078 = vdwg.mxu0
    %1079 = vmatprep.subr.mxu0 0.0
    %v1080 = vand.u32 %v626, 4294901760
    %1081 = vmatpush1.msra.mxu0 %v1080
    %1082 = vmatprep.subr.mxu0 0.0
    %v1083 = vand.u32 %v627, 4294901760
    %1084 = vmatpush1.msra.mxu0 %v1083
    %1085 = vmatprep.subr.mxu0 0.0
    %v1086 = vand.u32 %v628, 4294901760
    %1087 = vmatpush1.msra.mxu0 %v1086
    %1088 = vmatprep.subr.mxu0 0.0
    %1089 = vmatpush1.msra.mxu0 0.0
    %1090 = vmatprep.subr.mxu0 0.0
    %1091 = vmatpush1.msra.mxu0 0.0
    %1092 = vmatprep.subr.mxu0 0.0
    %1093 = vmatpush1.msra.mxu0 0.0
    %1094 = vmatprep.subr.mxu0 0.0
    %1095 = vmatpush1.msra.mxu0 0.0
    %1096 = vmatprep.subr.mxu0 0.0
    %1097 = vmatpush1.msra.mxu0 0.0
    %1098 = vmatprep.subr.mxu0 0.0
    %1099 = vmatpush1.msra.mxu0 0.0
    %1100 = vmatprep.subr.mxu0 0.0
    %1101 = vmatpush1.msra.mxu0 0.0
    %1102 = vmatprep.subr.mxu0 0.0
    %1103 = vmatpush1.msra.mxu0 0.0
    %1104 = vmatprep.subr.mxu0 0.0
    %1105 = vmatpush1.msra.mxu0 0.0
    %1106 = vmatprep.subr.mxu0 0.0
    %1107 = vmatpush1.msra.mxu0 0.0
    %1108 = vmatprep.subr.mxu0 0.0
    %1109 = vmatpush1.msra.mxu0 0.0
    %1110 = vmatprep.subr.mxu0 0.0
    %1111 = vmatpush1.msra.mxu0 0.0
    %1112 = vmatprep.subr.mxu0 0.0
    %1113 = vmatpush1.msra.mxu0 0.0
    %1114 = vmatprep.subr.mxu0 0.0
    %1115 = vmatpush1.msra.mxu0 0.0
    %1116 = vmatprep.subr.mxu0 0.0
    %1117 = vmatpush1.msra.mxu0 0.0
    %1118 = vmatprep.subr.mxu0 0.0
    %1119 = vmatpush1.msra.mxu0 0.0
    %1120 = vmatprep.subr.mxu0 0.0
    %1121 = vmatpush1.msra.mxu0 0.0
    %1122 = vmatprep.subr.mxu0 0.0
    %1123 = vmatpush1.msra.mxu0 0.0
    %1124 = vmatprep.subr.mxu0 0.0
    %1125 = vmatpush1.msra.mxu0 0.0
    %1126 = vmatprep.subr.mxu0 0.0
    %1127 = vmatpush1.msra.mxu0 0.0
    %1128 = vmatprep.subr.mxu0 0.0
    %1129 = vmatpush1.msra.mxu0 0.0
    %1130 = vmatprep.subr.mxu0 0.0
    %1131 = vmatpush1.msra.mxu0 0.0
    %1132 = vmatprep.subr.mxu0 0.0
    %1133 = vmatpush1.msra.mxu0 0.0
    %1134 = vmatprep.subr.mxu0 0.0
    %1135 = vmatpush1.msra.mxu0 0.0
    %1136 = vmatprep.subr.mxu0 0.0
    %1137 = vmatpush1.msra.mxu0 0.0
    %1138 = vmatprep.subr.mxu0 0.0
    %1139 = vmatpush1.msra.mxu0 0.0
    %1140 = vmatprep.subr.mxu0 0.0
    %1141 = vmatpush1.msra.mxu0 0.0
    %1142 = vmatprep.subr.mxu0 0.0
    %1143 = vmatpush1.msra.mxu0 0.0
    %1144 = vmatprep.subr.mxu0 0.0
    %1145 = vmatpush1.msra.mxu0 0.0
    %1146 = vmatprep.mubr.f32.mxu0 0.0
    %v1147 = vand.u32 %v639, 4294901760
    %1148 = vmatmul.mubr.f32.gmra.mrb[0].mxu0 %v1147
    %v1149 = vpop.f32.mrb[0].mxu0
    %v1150 = vadd.f32 %v1070, %v1149
    %v1151 = vpop.f32.mrb[0].mxu0
    %1152 = vmatprep.mubr.f32.mxu0 0.0
    %v1153 = vand.u32 %v642, 4294901760
    %1154 = vmatmul.mubr.f32.gmra.mrb[0].mxu0 %v1153
    %v1155 = vpop.f32.mrb[0].mxu0
    %v1156 = vadd.f32 %v1076, %v1155
    %v1157 = vpop.f32.mrb[0].mxu0
    %1158 = vdwg.mxu0
    %v1159 = vmax.f32 %v1150, 0.0
    %v1160 = vmax.f32 %v1156, 0.0
    %1161 = vset.pattern.permute.xlu0 36
    %1162 = vperm.xlu0 %1161, %v26
    %v1163 = vpop.permute.xlu0 %1162
    %1165 = vset.pattern.permute.xlu0 36
    %1166 = vperm.xlu0 %1165, %v27
    %v1167 = vpop.permute.xlu0 %1166
    %v1169 = vmul.f32 %v1163, %v1159
    %v1170 = vmul.f32 %v1167, %v1160
    %v1171 = vadd.f32 %v1169, %v1170
    %v1172 = vrot.slane %v1171, 4
    %v1173 = vadd.f32 %v1171, %v1172
    %v1174 = vrot.slane %v1173, 2
    %v1175 = vadd.f32 %v1173, %v1174
    %v1176 = vrot.slane %v1175, 1
    %v1177 = vadd.f32 %v1175, %v1176
    %1178 = vset.pattern.permute.xlu0 37
    %1179 = vperm.xlu0 %1178, %v26
    %v1180 = vpop.permute.xlu0 %1179
    %v1182 = vadd.f32 %v1177, %v1180
    %1183 = vst [vmem:[%s2] sm:$0x1] %v1182
    // Predicated region
    $region14: #{dnn_forward.1} parent=1 // pred_check
      _
    $region15: #{dnn_forward.1} parent=1 // pred_check_branch
      %1185 = sbr.rel (0) target = $region17
    $region16: #{dnn_forward.1} parent=1 // pred_region
      _
    $region17: #{dnn_forward.1} parent=1 // pred_fallthru
      _
    // Predicated region
    $region18: #{dnn_forward.1} parent=1 // pred_check
      _
    $region19: #{dnn_forward.1} parent=1 // pred_check_branch
      %1187 = sbr.rel (0) target = $region21
    $region20: #{dnn_forward.1} parent=1 // pred_region
      _
    $region21: #{dnn_forward.1} parent=1 // pred_fallthru
      _
    %1188 = vsyncpa [#allocation3], 1

</llo_original>
